<compile_context>
chip_gen: v5e
topology: v5e:2x2
jax: 0.10.0
libtpu: 0.0.40
codegen_flags: <defaults>
</compile_context>

<pallas_src>
import jax
import jax.numpy as jnp
from jax.experimental import pallas as pl
from jax.experimental.pallas import tpu as pltpu

_MIB = 1024 * 1024


def _round_up(x, m):
    return ((x + m - 1) // m) * m


def _pick_tile(dim, align, max_tile, waste_frac=0.25):
    """Tile size (multiple of `align`, <= max_tile) for a dim of size `dim`,
    preferring large tiles whose zero-padding waste stays bounded."""
    dim_a = _round_up(dim, align)
    if dim_a <= max_tile:
        return dim_a                       # single tile, minimal padding
    cands = []
    t = max_tile
    while t >= align:
        cands.append(t)
        t //= 2
    for t in cands:                        # descending: biggest acceptable tile
        if _round_up(dim, t) - dim_a <= waste_frac * dim_a:
            return t
    return min(cands, key=lambda c: (_round_up(dim, c), -c))


# ----------------------------------------------------------------------------
# Kernels
# ----------------------------------------------------------------------------
def _dense_resident_kernel(x_ref, w_ref, b_ref, o_ref):
    # x_ref: (tm, d_in_p)   w_ref: (d_in_p, d_out_p)  -- resident, DMA'd once
    # b_ref: (1, d_out_p)   o_ref: (tm, d_out_p)
    y = jnp.dot(x_ref[...], w_ref[...], preferred_element_type=jnp.float32)
    o_ref[...] = (y + b_ref[...].astype(jnp.float32)).astype(o_ref.dtype)


def _dense_tiled_kernel_f32out(x_ref, w_ref, b_ref, o_ref):
    # f32 output: accumulate straight into the resident output block
    # (no scratch, no finalize copy).  K is the innermost "arbitrary" axis.
    k = pl.program_id(2)

    @pl.when(k == 0)
    def _init():
        o_ref[...] = jnp.broadcast_to(b_ref[...], o_ref.shape)

    o_ref[...] += jnp.dot(x_ref[...], w_ref[...],
                          preferred_element_type=jnp.float32)


def _dense_tiled_kernel(x_ref, w_ref, b_ref, o_ref, acc_ref):
    # Non-f32 output: f32 scratch accumulator, single cast at the last K step.
    k = pl.program_id(2)

    @pl.when(k == 0)
    def _init():
        acc_ref[...] = jnp.broadcast_to(b_ref[...], acc_ref.shape)

    acc_ref[...] += jnp.dot(x_ref[...], w_ref[...],
                            preferred_element_type=jnp.float32)

    @pl.when(k == pl.num_programs(2) - 1)
    def _finalize():
        o_ref[...] = acc_ref[...].astype(o_ref.dtype)


# ----------------------------------------------------------------------------
# Wrapper
# ----------------------------------------------------------------------------
def _dense_matmul_pallas(x2d, weight, bias, *,
                         compute_dtype=jnp.bfloat16,
                         force_path=None):
    """y = x2d @ weight.T + bias via a Pallas TPU GEMM.

    x2d: (B, d_in); weight: (d_out, d_in) [PyTorch layout]; bias: (d_out,).
    Returns (B, d_out) in x2d's dtype. force_path in {None,"resident","tiled"}.
    """
    B, d_in = x2d.shape
    d_out, d_in_w = weight.shape
    assert d_in_w == d_in, (weight.shape, x2d.shape)

    out_dtype = x2d.dtype
    out_itemsize = jnp.dtype(out_dtype).itemsize
    c_itemsize = jnp.dtype(compute_dtype).itemsize

    # Lane-dense padding targets (last dims -> multiples of 128).
    d_in_128 = _round_up(d_in, 128)
    d_out_128 = _round_up(d_out, 128)

    # Row tile: multiple of 16 (bf16 sublane packing), capped at 512.
    tm = _pick_tile(B, 16, 512)
    Bp = _round_up(B, tm)
    num_i = Bp // tm

    # ---- choose path: resident weight vs. fully tiled GEMM -----------------
    resident_vmem = (
        2 * tm * d_in_128 * c_itemsize            # x tile, double-buffered
        + 2 * tm * d_out_128 * out_itemsize       # out tile, double-buffered
        + 2 * d_in_128 * d_out_128 * c_itemsize   # weight (conservative: x2)
        + 2 * d_out_128 * 4                       # bias
    )
    use_resident = (
        d_in_128 * d_out_128 * c_itemsize <= 4 * _MIB   # weight small enough
        and resident_vmem <= 24 * _MIB
    )
    if force_path == "resident":
        use_resident = True
    elif force_path == "tiled":
        use_resident = False

    if use_resident:
        d_in_p, d_out_p = d_in_128, d_out_128
        grid = (num_i,)
        in_specs = [
            pl.BlockSpec((tm, d_in_p), lambda i: (i, 0)),          # activations
            pl.BlockSpec((d_in_p, d_out_p), lambda i: (0, 0)),     # resident W
            pl.BlockSpec((1, d_out_p), lambda i: (0, 0)),          # bias
        ]
        out_specs = pl.BlockSpec((tm, d_out_p), lambda i: (i, 0))
        scratch_shapes = []
        kernel = _dense_resident_kernel
        dim_sem = ("parallel",)
        vmem_est = resident_vmem
    else:
        tn = _pick_tile(d_out, 128, 512)
        tk = _pick_tile(d_in, 128, 1024)
        # v7x has two TensorCores: make sure at least one "parallel" grid axis
        # has >= 2 steps (neutral on v5e / v6e which have a single TC).
        if (num_i == 1 and _round_up(d_out, tn) // tn == 1
                and d_out_128 >= 256 and d_out_128 % 256 == 0):
            tn = d_out_128 // 2
        d_out_p = _round_up(d_out, tn)
        d_in_p = _round_up(d_in, tk)
        num_j = d_out_p // tn
        num_k = d_in_p // tk
        grid = (num_i, num_j, num_k)
        in_specs = [
            pl.BlockSpec((tm, tk), lambda i, j, k: (i, k)),        # activations
            pl.BlockSpec((tk, tn), lambda i, j, k: (k, j)),        # W (d_in,d_out)
            pl.BlockSpec((1, tn), lambda i, j, k: (0, j)),         # bias
        ]
        out_specs = pl.BlockSpec((tm, tn), lambda i, j, k: (i, j))
        if out_dtype == jnp.float32:
            kernel = _dense_tiled_kernel_f32out
            scratch_shapes = []
            acc_bytes = 0
        else:
            kernel = _dense_tiled_kernel
            scratch_shapes = [pltpu.VMEM((tm, tn), jnp.float32)]
            acc_bytes = tm * tn * 4
        dim_sem = ("parallel", "parallel", "arbitrary")
        vmem_est = (2 * (tm * tk + tk * tn) * c_itemsize
                    + 2 * tm * tn * out_itemsize
                    + 2 * tn * 4 + acc_bytes)

    # ---- cast to the MXU compute dtype; zero-pad only when needed ----------
    x_c = x2d.astype(compute_dtype)
    w_c = weight.T.astype(compute_dtype)          # (d_in, d_out): plain x @ W
    b_c = bias.astype(jnp.float32)
    if (Bp, d_in_p) != (B, d_in):
        x_c = jnp.pad(x_c, ((0, Bp - B), (0, d_in_p - d_in)))
    if (d_in_p, d_out_p) != (d_in, d_out):
        w_c = jnp.pad(w_c, ((0, d_in_p - d_in), (0, d_out_p - d_out)))
    if d_out_p != d_out:
        b_c = jnp.pad(b_c, (0, d_out_p - d_out))
    b_c = b_c.reshape(1, d_out_p)

    cost = pl.CostEstimate(
        flops=2 * Bp * d_in_p * d_out_p,
        transcendentals=0,
        bytes_accessed=(c_itemsize * (Bp * d_in_p + d_in_p * d_out_p)
                        + out_itemsize * Bp * d_out_p + 4 * d_out_p),
    )
    # Cap well under v7x's 64 MiB per-TC VMEM; plenty of room on v5e/v6e.
    vmem_limit = int(min(48 * _MIB, max(32 * _MIB, 2 * vmem_est)))

    out_p = pl.pallas_call(
        kernel,
        out_shape=jax.ShapeDtypeStruct((Bp, d_out_p), out_dtype),
        grid_spec=pltpu.PrefetchScalarGridSpec(
            num_scalar_prefetch=0,
            grid=grid,
            in_specs=in_specs,
            out_specs=out_specs,
            scratch_shapes=scratch_shapes,
        ),
        compiler_params=pltpu.CompilerParams(
            dimension_semantics=dim_sem,
            vmem_limit_bytes=vmem_limit,
        ),
        cost_estimate=cost,
    )(x_c, w_c, b_c)

    if (Bp, d_out_p) != (B, d_out):
        out_p = out_p[:B, :d_out]
    return out_p


def dense_forward(x, weight, bias, *, compute_dtype=jnp.bfloat16, force_path=None):
    """Pallas equivalent of Dense.forward: nn.Linear(x)[..., None].

    x: (..., input_dim); weight: (output_dim, input_dim) [PyTorch layout];
    bias: (output_dim,). Returns (..., output_dim, 1) in x.dtype.
    """
    lead = x.shape[:-1]
    d_in = x.shape[-1]
    d_out = weight.shape[0]
    x2d = x.reshape(-1, d_in)
    out2d = _dense_matmul_pallas(x2d, weight, bias,
                                 compute_dtype=compute_dtype,
                                 force_path=force_path)
    # Trailing singleton dim ([..., None] in PyTorch) added in the wrapper.
    return out2d.reshape(*lead, d_out)[..., None]


if __name__ == "__main__":
    key = jax.random.PRNGKey(0)
    k_x, k_w, k_b = jax.random.split(key, 3)

    lead = (2, 8)            # arbitrary leading dims (e.g. batch x time)
    input_dim = 32
    output_dim = 16

    # Deterministic "parameters" (Kaiming-uniform-ish range like nn.Linear).
    bound = 1.0 / (input_dim ** 0.5)
    weight = jax.random.uniform(k_w, (output_dim, input_dim),
                                minval=-bound, maxval=bound, dtype=jnp.float32)
    bias = jax.random.uniform(k_b, (output_dim,),
                              minval=-bound, maxval=bound, dtype=jnp.float32)
    x = jax.random.normal(k_x, lead + (input_dim,), dtype=jnp.float32)

    # Reference with the same bf16-rounded operands the kernel feeds the MXU
    # (accumulation is f32 in both), plus the full-precision f32 reference.
    xb = x.astype(jnp.bfloat16).astype(jnp.float32)
    wb = weight.astype(jnp.bfloat16).astype(jnp.float32)
    ref_bf16 = (xb @ wb.T + bias)[..., None]
    ref_f32 = (x @ weight.T + bias)[..., None]

    for path in ("resident", "tiled"):
        out = dense_forward(x, weight, bias, force_path=path)
        out = jax.block_until_ready(out)
        assert out.shape == lead + (output_dim, 1), (path, out.shape)
        err_b = float(jnp.max(jnp.abs(out - ref_bf16)))
        err_f = float(jnp.max(jnp.abs(out - ref_f32)))
        assert jnp.allclose(out, ref_bf16, atol=1e-4, rtol=1e-4), (path, err_b)
        assert jnp.allclose(out, ref_f32, atol=5e-2, rtol=5e-2), (path, err_f)

    print("KERNEL_OK")
</pallas_src>

<mosaic_0001>
module attributes {stable_mosaic.version = 11 : i64} {
  func.func @_dense_resident_kernel(%arg0: i32, %arg1: memref<16x128xbf16, #tpu.memory_space<vmem>>, %arg2: memref<128x128xbf16, #tpu.memory_space<vmem>>, %arg3: memref<1x128xf32, #tpu.memory_space<vmem>>, %arg4: memref<16x128xf32, #tpu.memory_space<vmem>>) attributes {dimension_semantics = [#tpu.dimension_semantics<parallel>], iteration_bounds = array<i64: 1>, scalar_prefetch = 0 : i64, scratch_operands = 0 : i64, tpu.core_type = #tpu.core_type<tc>, window_params = [{transform_indices = @transform_0, window_bounds = array<i64: 16, 128>}, {pipeline_mode = #tpu.pipeline_mode<synchronous>, transform_indices = @transform_1, window_bounds = array<i64: 128, 128>}, {pipeline_mode = #tpu.pipeline_mode<synchronous>, transform_indices = @transform_2, window_bounds = array<i64: 1, 128>}, {transform_indices = @transform_3, window_bounds = array<i64: 16, 128>}]} {
    %c0 = arith.constant 0 : index
    %c0_0 = arith.constant 0 : index
    %0 = vector.load %arg1[%c0, %c0_0] : memref<16x128xbf16, #tpu.memory_space<vmem>>, vector<16x128xbf16>
    %c0_1 = arith.constant 0 : index
    %c0_2 = arith.constant 0 : index
    %1 = vector.load %arg2[%c0_1, %c0_2] : memref<128x128xbf16, #tpu.memory_space<vmem>>, vector<128x128xbf16>
    %cst = arith.constant dense<0.000000e+00> : vector<16x128xf32>
    %2 = tpu.matmul %0, %1, %cst {dimension_numbers = #tpu.dot_dimension_numbers<[1], [0], [0], [1], [0, 0, 1, 1], [], []>} : vector<16x128xbf16>, vector<128x128xbf16>, vector<16x128xf32> -> vector<16x128xf32>
    %c0_3 = arith.constant 0 : index
    %c0_4 = arith.constant 0 : index
    %3 = vector.load %arg3[%c0_3, %c0_4] : memref<1x128xf32, #tpu.memory_space<vmem>>, vector<1x128xf32>
    %4 = vector.broadcast %3 : vector<1x128xf32> to vector<16x128xf32>
    %5 = arith.addf %2, %4 : vector<16x128xf32>
    %c0_5 = arith.constant 0 : index
    %c0_6 = arith.constant 0 : index
    %6 = vector.load %arg4[%c0_5, %c0_6] : memref<16x128xf32, #tpu.memory_space<vmem>>, vector<16x128xf32>
    tpu.vector_store %arg4[%c0_5, %c0_6], %5 {strides = array<i32>} : memref<16x128xf32, #tpu.memory_space<vmem>>, vector<16x128xf32>,
    return
  }
  func.func @transform_0(%arg0: i32) -> (i32, i32) {
    %c0_i32 = arith.constant 0 : i32
    %c0_i32_0 = arith.constant 0 : i32
    return %arg0, %c0_i32 : i32, i32
  }
  func.func @transform_1(%arg0: i32) -> (i32, i32) {
    %c0_i32 = arith.constant 0 : i32
    %c0_i32_0 = arith.constant 0 : i32
    %c0_i32_1 = arith.constant 0 : i32
    return %c0_i32, %c0_i32_0 : i32, i32
  }
  func.func @transform_2(%arg0: i32) -> (i32, i32) {
    %c0_i32 = arith.constant 0 : i32
    %c0_i32_0 = arith.constant 0 : i32
    %c0_i32_1 = arith.constant 0 : i32
    return %c0_i32, %c0_i32_0 : i32, i32
  }
  func.func @transform_3(%arg0: i32) -> (i32, i32) {
    %c0_i32 = arith.constant 0 : i32
    %c0_i32_0 = arith.constant 0 : i32
    return %arg0, %c0_i32 : i32, i32
  }
}

</mosaic_0001>

<llo_original>
// kernel: tpu_custom_call.1
$region0: #{tpu_custom_call.1}
  #allocation0 [shape = 'u32[]', space=smem, size = 0x4, offset = 0x4, fixed_abs, tag = 'smem constant byte address 0x4 - core index']
  #allocation1 [shape = 'u32[72,128]{1,0:T(1,128)}', space=vmem, size = 0x9000, scoped, tag = 'internal scratch']
  %s0 = inlined_call_operand.hbm [shape: bf16[16,128], index: 0, kind: input, shape index: {}]
  %s1 = inlined_call_operand.hbm [shape: bf16[128,128], index: 1, kind: input, shape index: {}]
  %s2 = inlined_call_operand.vmem [shape: f32[1,128], index: 2, kind: input, shape index: {}]
  %s3 = inlined_call_operand.hbm [shape: f32[16,128], index: 3, kind: output, shape index: {}]
  %s4 = sld [smem:[#allocation0]]
  $region30: #{tpu_custom_call.1} parent=0
    _
  %s6 = ssub.s32 1, %s4
  %s7 = scalar_select 0, %s6, %s4
  $region1: #{tpu_custom_call.1} parent=0
    #allocation2 [shape = 'u8[4096]{0}', space=vmem, size = 0x1000, scoped, tag = 'input window, operand 0, single buffered']
    #allocation3 [shape = 's32[1]{0}', space=sflag, size = 0x4, scoped, tag = 'scoped memory for tpu_custom_call.1']
    #allocation4 [shape = 's32[1]{0}', space=sflag, size = 0x4, scoped, tag = 'scoped memory for tpu_custom_call.1']
    #allocation5 [shape = 'u8[32768]{0}', space=vmem, size = 0x8000, scoped, tag = 'input window, operand 1, single buffered']
    #allocation6 [shape = 's32[1]{0}', space=sflag, size = 0x4, scoped, tag = 'scoped memory for tpu_custom_call.1']
    #allocation7 [shape = 'u8[8192]{0}', space=vmem, size = 0x2000, scoped, tag = 'output window, operand 0, single buffered']
    %8 = vsyncpa [#allocation3], 0
    %9 = vsyncpa [#allocation6], 0
    %10 = vsyncpa [#allocation4], 0
    // Predicated region
    $region2: #{tpu_custom_call.1} parent=1 // pred_check
      _
    $region3: #{tpu_custom_call.1} parent=1 // pred_check_branch
      %12 = sbr.rel (0) target = $region5
    $region4: #{tpu_custom_call.1} parent=1 // pred_region
      %14 = vsyncadd [#allocation3], 0
      %s15 = sshll.u32 %s0, 4
      %s16 = int_to_ptr.hbm [resolvable:$true] %s15
      %s17 = sshll.u32 [#allocation2], 4
      %s18 = int_to_ptr.vmem [resolvable:$true] %s17
      %23 = dma.hbm_to_vmem [thread:$0]  %s16, 128, %s18, [#allocation3], 64, 64, 4
    $region5: #{tpu_custom_call.1} parent=1 // pred_fallthru
      _
    // Predicated region
    $region6: #{tpu_custom_call.1} parent=1 // pred_check
      _
    $region7: #{tpu_custom_call.1} parent=1 // pred_check_branch
      %25 = sbr.rel (0) target = $region9
    $region8: #{tpu_custom_call.1} parent=1 // pred_region
      %27 = vsyncadd [#allocation6], 0
      %s28 = sshll.u32 %s1, 4
      %s29 = int_to_ptr.hbm [resolvable:$true] %s28
      %s30 = sshll.u32 [#allocation5], 4
      %s31 = int_to_ptr.vmem [resolvable:$true] %s30
      %36 = dma.hbm_to_vmem [thread:$0]  %s29, 1024, %s31, [#allocation6], 64, 64, 4
    $region9: #{tpu_custom_call.1} parent=1 // pred_fallthru
      _
    // Predicated region
    $region10: #{tpu_custom_call.1} parent=1 // pred_check
      _
    $region11: #{tpu_custom_call.1} parent=1 // pred_check_branch
      %38 = sbr.rel (0) target = $region13
    $region12: #{tpu_custom_call.1} parent=1 // pred_region
      _
    $region13: #{tpu_custom_call.1} parent=1 // pred_fallthru
      _
    // Predicated region
    $region14: #{tpu_custom_call.1} parent=1 // pred_check
      _
    $region15: #{tpu_custom_call.1} parent=1 // pred_check_branch
      %40 = sbr.rel (0) target = $region17
    $region16: #{tpu_custom_call.1} parent=1 // pred_region
      %42 = dma.done [#allocation3], 128
    $region17: #{tpu_custom_call.1} parent=1 // pred_fallthru
      _
    // Predicated region
    $region18: #{tpu_custom_call.1} parent=1 // pred_check
      _
    $region19: #{tpu_custom_call.1} parent=1 // pred_check_branch
      %44 = sbr.rel (0) target = $region21
    $region20: #{tpu_custom_call.1} parent=1 // pred_region
      %46 = dma.done [#allocation6], 1024
    $region21: #{tpu_custom_call.1} parent=1 // pred_fallthru
      _
    %v47 = vld [vmem:[#allocation2] sm:$0xf]
    %v48 = vld [vmem:[#allocation2 + $0x4] sm:$0xf]
    %v49 = vld [vmem:[#allocation5] sm:$0xf]
    %v50 = vld [vmem:[#allocation5 + $0x4] sm:$0xf]
    %v51 = vld [vmem:[#allocation5 + $0x8] sm:$0xf]
    %v52 = vld [vmem:[#allocation5 + $0xc] sm:$0xf]
    %v53 = vld [vmem:[#allocation5 + $0x10] sm:$0xf]
    %v54 = vld [vmem:[#allocation5 + $0x14] sm:$0xf]
    %v55 = vld [vmem:[#allocation5 + $0x18] sm:$0xf]
    %v56 = vld [vmem:[#allocation5 + $0x1c] sm:$0xf]
    %v57 = vld [vmem:[#allocation5 + $0x20] sm:$0xf]
    %v58 = vld [vmem:[#allocation5 + $0x24] sm:$0xf]
    %v59 = vld [vmem:[#allocation5 + $0x28] sm:$0xf]
    %v60 = vld [vmem:[#allocation5 + $0x2c] sm:$0xf]
    %v61 = vld [vmem:[#allocation5 + $0x30] sm:$0xf]
    %v62 = vld [vmem:[#allocation5 + $0x34] sm:$0xf]
    %v63 = vld [vmem:[#allocation5 + $0x38] sm:$0xf]
    %v64 = vld [vmem:[#allocation5 + $0x3c] sm:$0xf]
    %v65 = vld [vmem:[%s2] sm:$0x1]
    %v67 = vperm.slane %v65, 0
    %v71 = vunpack.c.l.b16 %v47
    %v72 = vunpack.c.l.b16 %v48
    %v73 = vpack.c.b16 %v72, %v71
    %v91 = vunpack.c.l.b16 %v49
    %v92 = vunpack.c.l.b16 %v50
    %v93 = vunpack.c.l.b16 %v51
    %v94 = vunpack.c.l.b16 %v52
    %v95 = vunpack.c.l.b16 %v53
    %v96 = vunpack.c.l.b16 %v54
    %v97 = vunpack.c.l.b16 %v55
    %v98 = vunpack.c.l.b16 %v56
    %v99 = vunpack.c.l.b16 %v57
    %v100 = vunpack.c.l.b16 %v58
    %v101 = vunpack.c.l.b16 %v59
    %v102 = vunpack.c.l.b16 %v60
    %v103 = vunpack.c.l.b16 %v61
    %v104 = vunpack.c.l.b16 %v62
    %v105 = vunpack.c.l.b16 %v63
    %v106 = vunpack.c.l.b16 %v64
    %v107 = vpack.c.b16 %v92, %v91
    %v108 = vpack.c.b16 %v94, %v93
    %v109 = vpack.c.b16 %v96, %v95
    %v110 = vpack.c.b16 %v98, %v97
    %v111 = vpack.c.b16 %v100, %v99
    %v112 = vpack.c.b16 %v102, %v101
    %v113 = vpack.c.b16 %v104, %v103
    %v114 = vpack.c.b16 %v106, %v105
    %123 = vmatpush.bf16.msra.mxu0 %v114
    %124 = vmatpush.bf16.msra.mxu0 %v113
    %125 = vmatpush.bf16.msra.mxu0 %v112
    %126 = vmatpush.bf16.msra.mxu0 %v111
    %127 = vmatpush.bf16.msra.mxu0 %v110
    %128 = vmatpush.bf16.msra.mxu0 %v109
    %129 = vmatpush.bf16.msra.mxu0 %v108
    %130 = vmatpush.bf16.msra.mxu0 %v107
    %131 = vmatmul.bf16.gmra.mxu0 %v73
    %v132 = vpop.f32.mrf.mxu0
    %v133 = vadd.f32 %v67, %v132
    %v134 = vpop.f32.mrf.mxu0
    %v135 = vadd.f32 %v67, %v134
    %136 = vdwg.mxu0
    %137 = vst [vmem:[#allocation7] sm:$0xff] %v133
    %138 = vst [vmem:[#allocation7 + $0x8] sm:$0xff] %v135
    // Predicated region
    $region22: #{tpu_custom_call.1} parent=1 // pred_check
      _
    $region23: #{tpu_custom_call.1} parent=1 // pred_check_branch
      %140 = sbr.rel (0) target = $region25
    $region24: #{tpu_custom_call.1} parent=1 // pred_region
      %142 = vsyncadd [#allocation4], 0
      %s143 = sshll.u32 [#allocation7], 4
      %s144 = int_to_ptr.vmem [resolvable:$true] %s143
      %s145 = sshll.u32 %s3, 4
      %s146 = int_to_ptr.hbm [resolvable:$true] %s145
      %151 = dma.vmem_to_hbm [thread:$0]  %s144, 256, %s146, [#allocation4], 128, 128, 8
    $region25: #{tpu_custom_call.1} parent=1 // pred_fallthru
      _
    // Predicated region
    $region26: #{tpu_custom_call.1} parent=1 // pred_check
      _
    $region27: #{tpu_custom_call.1} parent=1 // pred_check_branch
      %153 = sbr.rel (0) target = $region29
    $region28: #{tpu_custom_call.1} parent=1 // pred_region
      %155 = dma.done [#allocation4], 256
    $region29: #{tpu_custom_call.1} parent=1 // pred_fallthru
      _
    %156 = vsyncpa [#allocation3], 1
    %157 = vsyncpa [#allocation6], 1
    %158 = vsyncpa [#allocation4], 1

</llo_original>
